<compile_context>
chip_gen: v6e
topology: v6e:2x2x1
jax: 0.10.0
libtpu: 0.0.40
codegen_flags: <defaults>
</compile_context>

<pallas_src>
import jax
import jax.numpy as jnp
from jax.experimental import pallas as pl
from jax.experimental.pallas import tpu as pltpu

_MIB = 1 << 20


def add_pooler_kernel(x_ref, w_ref, b_ref, o_ref):
    # x_ref: [B, H]   bf16, resident (block index constant across the N grid)
    # w_ref: [H, tn]  bf16, pre-transposed [in, out] layout -> plain dot, no in-kernel transpose
    # b_ref: [1, tn]  f32
    # o_ref: [B, tn]
    acc = jnp.dot(x_ref[...], w_ref[...], preferred_element_type=jnp.float32)
    o_ref[...] = jnp.tanh(acc + b_ref[...]).astype(o_ref.dtype)


def _tpu_info():
    """Returns (vmem_capacity_bytes, is_v7_like_two_core_chip)."""
    vmem_cap = None
    try:
        vmem_cap = int(pltpu.get_tpu_info().vmem_capacity_bytes)
    except Exception:
        pass
    kind = ""
    try:
        kind = jax.devices()[0].device_kind.lower()
    except Exception:
        pass
    is_v7 = any(tag in kind for tag in ("v7", "tpu7", "7x"))
    if vmem_cap is None:
        # Conservative fallback: v7x per-TensorCore capacity.
        vmem_cap = 64 * _MIB if is_v7 else 128 * _MIB
    return vmem_cap, is_v7


def _vmem_budget(vmem_cap):
    if vmem_cap >= 100 * _MIB:
        # v5e / v6e: 128 MiB physical, single TC owns it -> use most of it so
        # large H keeps tn=H or tn=H/2 instead of dropping to tiny tiles.
        return 96 * _MIB
    # v7x (64 MiB per TC) or unknown: stay well under the cap.
    return max(16 * _MIB, min(vmem_cap - 16 * _MIB, 28 * _MIB))


def _vmem_need_bytes(B, H, tn, out_itemsize):
    w = 2 * H * tn * 2            # double-buffered bf16 (H, tn) weight tiles
    x = B * H * 2                 # resident bf16 x (block index never changes -> one buffer)
    o = 2 * B * tn * out_itemsize  # double-buffered output tiles
    b = 2 * 1 * tn * 4            # double-buffered f32 bias tiles
    return w + x + o + b


def _select_tn(B, H, out_itemsize, budget, min_tiles):
    """Pick the output-feature tile width.

    Prefers exact divisors of H that are multiples of 128 (no ragged / padded
    tiles), largest first, subject to the VMEM budget and a minimum tile count
    (min_tiles=2 on v7x so the parallel axis feeds both TensorCores)."""
    if H % 128 != 0:
        return H  # tiny / odd hidden sizes: one full-array block, no tiling.
    cands = []
    for n_tiles in range(1, H // 128 + 1):
        if n_tiles < min_tiles:
            continue
        if H % n_tiles == 0 and (H // n_tiles) % 128 == 0:
            cands.append(H // n_tiles)  # decreasing tn as n_tiles grows
    # Last resort: ragged tiles (correct -- output store is masked -- but the
    # final padded tile wastes DMA, so divisors above are always preferred).
    for t in (512, 256, 128):
        if t < H and t not in cands:
            cands.append(t)
    for tn in cands:
        if _vmem_need_bytes(B, H, tn, out_itemsize) <= budget:
            return tn
    return 128


def add_pooler(cls_embedding, weight_t, bias, *, tn=None, out_dtype=None):
    """AddPooler forward: tanh(x @ W^T + b).

    cls_embedding: [B, H]
    weight_t:      [H, H]  nn.Linear weight ALREADY transposed to [in, out]
                   layout (do `weight.T` once at parameter-load time).
    bias:          [H]
    """
    B, H = cls_embedding.shape
    assert weight_t.shape == (H, H), weight_t.shape
    assert bias.shape == (H,), bias.shape

    if out_dtype is None:
        out_dtype = cls_embedding.dtype
    out_itemsize = jnp.dtype(out_dtype).itemsize

    # Stream operands to the MXU in bf16 (no-ops when params are stored bf16;
    # bf16 vs dial2vec's fp32 changes results at the ~1e-2 level).
    x = cls_embedding.astype(jnp.bfloat16)
    w = weight_t.astype(jnp.bfloat16)               # [in, out]: NO per-call transpose
    b2 = bias.astype(jnp.float32).reshape(1, H)     # 2-D f32 bias for broadcast

    vmem_cap, is_v7 = _tpu_info()
    budget = _vmem_budget(vmem_cap)
    min_tiles = 2 if is_v7 else 1                   # engage both v7x TensorCores
    if tn is None:
        tn = _select_tn(B, H, out_itemsize, budget, min_tiles)
    assert tn == H or tn % 128 == 0, f"tn={tn} must be a multiple of 128 or equal H"

    n_tiles = pl.cdiv(H, tn)
    need = _vmem_need_bytes(B, H, tn, out_itemsize)
    vmem_limit = int(min(vmem_cap, max(need + 8 * _MIB, 32 * _MIB)))

    cost = pl.CostEstimate(
        flops=2 * B * H * H,
        transcendentals=B * H,
        bytes_accessed=H * H * 2 + B * H * 2 + B * H * out_itemsize + H * 4,
    )

    return pl.pallas_call(
        add_pooler_kernel,
        out_shape=jax.ShapeDtypeStruct((B, H), out_dtype),
        grid_spec=pltpu.PrefetchScalarGridSpec(
            num_scalar_prefetch=0,
            grid=(n_tiles,),
            in_specs=[
                # x: constant block index -> not re-DMA'd across tiles.
                pl.BlockSpec((B, H), lambda j: (0, 0)),
                # weight: [H, tn] column tile of the pre-transposed weight.
                pl.BlockSpec((H, tn), lambda j: (0, j)),
                # bias tile.
                pl.BlockSpec((1, tn), lambda j: (0, j)),
            ],
            # Lane-dense output tile (tn multiple of 128 or == H).
            out_specs=pl.BlockSpec((B, tn), lambda j: (0, j)),
        ),
        compiler_params=pltpu.CompilerParams(
            dimension_semantics=("parallel",),  # independent N tiles -> v7x megacore split
            vmem_limit_bytes=vmem_limit,
        ),
        cost_estimate=cost,
    )(x, w, b2)


if __name__ == "__main__":
    # Small demo shapes. H=256 is a multiple of 128 so the divisor-tiling path
    # is exercised (single tile on v5e/v6e, two parallel 128-wide tiles on v7x).
    B, H = 8, 256

    key = jax.random.PRNGKey(0)
    kx, kw, kb = jax.random.split(key, 3)

    x_f32 = jax.random.normal(kx, (B, H), dtype=jnp.float32)
    w_f32 = jax.random.normal(kw, (H, H), dtype=jnp.float32) * 0.05   # nn.Linear [out, in]
    b_f32 = jax.random.normal(kb, (H,), dtype=jnp.float32) * 0.05

    # One-time "parameter load": store activations bf16 and the weight
    # transposed to [in, out] bf16, so the hot path pays no cast / transpose.
    x_bf16 = x_f32.astype(jnp.bfloat16)
    w_t_bf16 = w_f32.T.astype(jnp.bfloat16)

    out = add_pooler(x_bf16, w_t_bf16, b_f32, out_dtype=jnp.float32)
    out = jax.block_until_ready(out)

    # Reference: f32 math on the same bf16-rounded operands (matches the
    # kernel's bf16 streaming + f32 accumulation / epilogue).
    ref = jnp.tanh(x_bf16.astype(jnp.float32) @ w_t_bf16.astype(jnp.float32) + b_f32)

    assert out.shape == (B, H)
    max_err = float(jnp.max(jnp.abs(out - ref)))
    assert jnp.allclose(out, ref, atol=2e-2, rtol=2e-2), max_err

    print("KERNEL_OK")
</pallas_src>

<mosaic_0001>
module attributes {stable_mosaic.version = 11 : i64} {
  func.func @add_pooler_kernel(%arg0: i32, %arg1: memref<8x256xbf16, #tpu.memory_space<vmem>>, %arg2: memref<256x256xbf16, #tpu.memory_space<vmem>>, %arg3: memref<1x256xf32, #tpu.memory_space<vmem>>, %arg4: memref<8x256xf32, #tpu.memory_space<vmem>>) attributes {dimension_semantics = [#tpu.dimension_semantics<parallel>], iteration_bounds = array<i64: 1>, scalar_prefetch = 0 : i64, scratch_operands = 0 : i64, tpu.core_type = #tpu.core_type<tc>, window_params = [{pipeline_mode = #tpu.pipeline_mode<synchronous>, transform_indices = @transform_0, window_bounds = array<i64: 8, 256>}, {transform_indices = @transform_1, window_bounds = array<i64: 256, 256>}, {transform_indices = @transform_2, window_bounds = array<i64: 1, 256>}, {transform_indices = @transform_3, window_bounds = array<i64: 8, 256>}]} {
    %c0 = arith.constant 0 : index
    %c0_0 = arith.constant 0 : index
    %0 = vector.load %arg1[%c0, %c0_0] : memref<8x256xbf16, #tpu.memory_space<vmem>>, vector<8x256xbf16>
    %c0_1 = arith.constant 0 : index
    %c0_2 = arith.constant 0 : index
    %1 = vector.load %arg2[%c0_1, %c0_2] : memref<256x256xbf16, #tpu.memory_space<vmem>>, vector<256x256xbf16>
    %cst = arith.constant dense<0.000000e+00> : vector<8x256xf32>
    %2 = tpu.matmul %0, %1, %cst {dimension_numbers = #tpu.dot_dimension_numbers<[1], [0], [0], [1], [0, 0, 1, 1], [], []>} : vector<8x256xbf16>, vector<256x256xbf16>, vector<8x256xf32> -> vector<8x256xf32>
    %c0_3 = arith.constant 0 : index
    %c0_4 = arith.constant 0 : index
    %3 = vector.load %arg3[%c0_3, %c0_4] : memref<1x256xf32, #tpu.memory_space<vmem>>, vector<1x256xf32>
    %4 = vector.broadcast %3 : vector<1x256xf32> to vector<8x256xf32>
    %5 = arith.addf %2, %4 : vector<8x256xf32>
    %6 = math.tanh %5 : vector<8x256xf32>
    %c0_5 = arith.constant 0 : index
    %c0_6 = arith.constant 0 : index
    %7 = vector.load %arg4[%c0_5, %c0_6] : memref<8x256xf32, #tpu.memory_space<vmem>>, vector<8x256xf32>
    tpu.vector_store %arg4[%c0_5, %c0_6], %6 {strides = array<i32>} : memref<8x256xf32, #tpu.memory_space<vmem>>, vector<8x256xf32>,
    return
  }
  func.func @transform_0(%arg0: i32) -> (i32, i32) {
    %c0_i32 = arith.constant 0 : i32
    %c0_i32_0 = arith.constant 0 : i32
    %c0_i32_1 = arith.constant 0 : i32
    return %c0_i32, %c0_i32_0 : i32, i32
  }
  func.func @transform_1(%arg0: i32) -> (i32, i32) {
    %c0_i32 = arith.constant 0 : i32
    %c0_i32_0 = arith.constant 0 : i32
    return %c0_i32, %arg0 : i32, i32
  }
  func.func @transform_2(%arg0: i32) -> (i32, i32) {
    %c0_i32 = arith.constant 0 : i32
    %c0_i32_0 = arith.constant 0 : i32
    return %c0_i32, %arg0 : i32, i32
  }
  func.func @transform_3(%arg0: i32) -> (i32, i32) {
    %c0_i32 = arith.constant 0 : i32
    %c0_i32_0 = arith.constant 0 : i32
    return %c0_i32, %arg0 : i32, i32
  }
}

</mosaic_0001>

<llo_original>
// kernel: tpu_custom_call.1
$region0: #{tpu_custom_call.1}
  #allocation0 [shape = 'u32[]', space=smem, size = 0x4, offset = 0x4, fixed_abs, tag = 'smem constant byte address 0x4 - core index']
  #allocation1 [shape = 'u32[144,128]{1,0:T(1,128)}', space=vmem, size = 0x12000, scoped, tag = 'internal scratch']
  %s0 = inlined_call_operand.hbm [shape: bf16[8,256], index: 0, kind: input, shape index: {}]
  %s1 = inlined_call_operand.hbm [shape: bf16[256,256], index: 1, kind: input, shape index: {}]
  %s2 = inlined_call_operand.vmem [shape: f32[1,256], index: 2, kind: input, shape index: {}]
  %s3 = inlined_call_operand.hbm [shape: f32[8,256], index: 3, kind: output, shape index: {}]
  %s4 = sld [smem:[#allocation0]]
  $region30: #{tpu_custom_call.1} parent=0
    _
  %s6 = ssub.s32 1, %s4
  %s7 = scalar_select 0, %s6, %s4
  $region1: #{tpu_custom_call.1} parent=0
    #allocation2 [shape = 'u8[4096]{0}', space=vmem, size = 0x1000, scoped, tag = 'input window, operand 0, single buffered']
    #allocation3 [shape = 's32[1]{0}', space=sflag, size = 0x4, scoped, tag = 'scoped memory for tpu_custom_call.1']
    #allocation4 [shape = 's32[1]{0}', space=sflag, size = 0x4, scoped, tag = 'scoped memory for tpu_custom_call.1']
    #allocation5 [shape = 'u8[131072]{0}', space=vmem, size = 0x20000, scoped, tag = 'input window, operand 1, single buffered']
    #allocation6 [shape = 's32[1]{0}', space=sflag, size = 0x4, scoped, tag = 'scoped memory for tpu_custom_call.1']
    #allocation7 [shape = 'u8[8192]{0}', space=vmem, size = 0x2000, scoped, tag = 'output window, operand 0, single buffered']
    %8 = vsyncpa [#allocation3], 0
    %9 = vsyncpa [#allocation6], 0
    %10 = vsyncpa [#allocation4], 0
    // Predicated region
    $region2: #{tpu_custom_call.1} parent=1 // pred_check
      _
    $region3: #{tpu_custom_call.1} parent=1 // pred_check_branch
      %12 = sbr.rel (0) target = $region5
    $region4: #{tpu_custom_call.1} parent=1 // pred_region
      %s14 = ssub.s32 128, 128
      %15 = vsyncadd [#allocation3], %s14
      %s17 = sshll.u32 [#allocation2], 4
      %s18 = int_to_ptr.vmem [resolvable:$true] %s17
      %20 = dma.hbm_to_vmem [thread:$0]  %s0, 128, %s18, [#allocation3]
    $region5: #{tpu_custom_call.1} parent=1 // pred_fallthru
      _
    // Predicated region
    $region6: #{tpu_custom_call.1} parent=1 // pred_check
      _
    $region7: #{tpu_custom_call.1} parent=1 // pred_check_branch
      %22 = sbr.rel (0) target = $region9
    $region8: #{tpu_custom_call.1} parent=1 // pred_region
      %s24 = ssub.s32 4096, 4096
      %25 = vsyncadd [#allocation6], %s24
      %s26 = sshll.u32 [#allocation5], 4
      %s27 = int_to_ptr.vmem [resolvable:$true] %s26
      %32 = dma.hbm_to_vmem [thread:$0]  %s1, 4096, %s27, [#allocation6], 128, 128, 8
    $region9: #{tpu_custom_call.1} parent=1 // pred_fallthru
      _
    // Predicated region
    $region10: #{tpu_custom_call.1} parent=1 // pred_check
      _
    $region11: #{tpu_custom_call.1} parent=1 // pred_check_branch
      %34 = sbr.rel (0) target = $region13
    $region12: #{tpu_custom_call.1} parent=1 // pred_region
      _
    $region13: #{tpu_custom_call.1} parent=1 // pred_fallthru
      _
    // Predicated region
    $region14: #{tpu_custom_call.1} parent=1 // pred_check
      _
    $region15: #{tpu_custom_call.1} parent=1 // pred_check_branch
      %36 = sbr.rel (0) target = $region17
    $region16: #{tpu_custom_call.1} parent=1 // pred_region
      %37 = dma.done [#allocation3], 128
    $region17: #{tpu_custom_call.1} parent=1 // pred_fallthru
      _
    // Predicated region
    $region18: #{tpu_custom_call.1} parent=1 // pred_check
      _
    $region19: #{tpu_custom_call.1} parent=1 // pred_check_branch
      %39 = sbr.rel (0) target = $region21
    $region20: #{tpu_custom_call.1} parent=1 // pred_region
      %40 = dma.done [#allocation6], 4096
    $region21: #{tpu_custom_call.1} parent=1 // pred_fallthru
      _
    %v41 = vld [vmem:[#allocation2] sm:$0xff]
    %v42 = vld [vmem:[#allocation5] sm:$0xff]
    %v43 = vld [vmem:[#allocation5 + $0x8] sm:$0xff]
    %v44 = vld [vmem:[#allocation5 + $0x10] sm:$0xff]
    %v45 = vld [vmem:[#allocation5 + $0x18] sm:$0xff]
    %v46 = vld [vmem:[#allocation5 + $0x20] sm:$0xff]
    %v47 = vld [vmem:[#allocation5 + $0x28] sm:$0xff]
    %v48 = vld [vmem:[#allocation5 + $0x30] sm:$0xff]
    %v49 = vld [vmem:[#allocation5 + $0x38] sm:$0xff]
    %v50 = vld [vmem:[#allocation5 + $0x40] sm:$0xff]
    %v51 = vld [vmem:[#allocation5 + $0x48] sm:$0xff]
    %v52 = vld [vmem:[#allocation5 + $0x50] sm:$0xff]
    %v53 = vld [vmem:[#allocation5 + $0x58] sm:$0xff]
    %v54 = vld [vmem:[#allocation5 + $0x60] sm:$0xff]
    %v55 = vld [vmem:[#allocation5 + $0x68] sm:$0xff]
    %v56 = vld [vmem:[#allocation5 + $0x70] sm:$0xff]
    %v57 = vld [vmem:[#allocation5 + $0x78] sm:$0xff]
    %v58 = vld [vmem:[#allocation5 + $0x80] sm:$0xff]
    %v59 = vld [vmem:[#allocation5 + $0x88] sm:$0xff]
    %v60 = vld [vmem:[#allocation5 + $0x90] sm:$0xff]
    %v61 = vld [vmem:[#allocation5 + $0x98] sm:$0xff]
    %v62 = vld [vmem:[#allocation5 + $0xa0] sm:$0xff]
    %v63 = vld [vmem:[#allocation5 + $0xa8] sm:$0xff]
    %v64 = vld [vmem:[#allocation5 + $0xb0] sm:$0xff]
    %v65 = vld [vmem:[#allocation5 + $0xb8] sm:$0xff]
    %v66 = vld [vmem:[#allocation5 + $0xc0] sm:$0xff]
    %v67 = vld [vmem:[#allocation5 + $0xc8] sm:$0xff]
    %v68 = vld [vmem:[#allocation5 + $0xd0] sm:$0xff]
    %v69 = vld [vmem:[#allocation5 + $0xd8] sm:$0xff]
    %v70 = vld [vmem:[#allocation5 + $0xe0] sm:$0xff]
    %v71 = vld [vmem:[#allocation5 + $0xe8] sm:$0xff]
    %v72 = vld [vmem:[#allocation5 + $0xf0] sm:$0xff]
    %v73 = vld [vmem:[#allocation5 + $0xf8] sm:$0xff]
    %v74 = vld [vmem:[%s2] sm:$0x3]
    %v76 = vlaneseq
    %v77 = vshrl.u32 %v76, 7
    %v78 = vsub.s32 0, %v77
    %v79 = vrot.slane %v74, %v78
    %v80 = vlaneseq
    %v81 = vshrl.u32 %v80, 7
    %v82 = vsub.s32 1, %v81
    %v83 = vrot.slane %v74, %v82
    %v87 = vunpack.c.l.b16 %v41
    %v88 = vunpack.c.h.b16 %v41
    %v89 = vpack.c.b16 %v87, %v87
    %v90 = vpack.c.b16 %v88, %v88
    %v125 = vunpack.c.l.b16 %v42
    %v126 = vunpack.c.h.b16 %v42
    %v127 = vunpack.c.l.b16 %v43
    %v128 = vunpack.c.h.b16 %v43
    %v129 = vunpack.c.l.b16 %v44
    %v130 = vunpack.c.h.b16 %v44
    %v131 = vunpack.c.l.b16 %v45
    %v132 = vunpack.c.h.b16 %v45
    %v133 = vunpack.c.l.b16 %v46
    %v134 = vunpack.c.h.b16 %v46
    %v135 = vunpack.c.l.b16 %v47
    %v136 = vunpack.c.h.b16 %v47
    %v137 = vunpack.c.l.b16 %v48
    %v138 = vunpack.c.h.b16 %v48
    %v139 = vunpack.c.l.b16 %v49
    %v140 = vunpack.c.h.b16 %v49
    %v141 = vunpack.c.l.b16 %v50
    %v142 = vunpack.c.h.b16 %v50
    %v143 = vunpack.c.l.b16 %v51
    %v144 = vunpack.c.h.b16 %v51
    %v145 = vunpack.c.l.b16 %v52
    %v146 = vunpack.c.h.b16 %v52
    %v147 = vunpack.c.l.b16 %v53
    %v148 = vunpack.c.h.b16 %v53
    %v149 = vunpack.c.l.b16 %v54
    %v150 = vunpack.c.h.b16 %v54
    %v151 = vunpack.c.l.b16 %v55
    %v152 = vunpack.c.h.b16 %v55
    %v153 = vunpack.c.l.b16 %v56
    %v154 = vunpack.c.h.b16 %v56
    %v155 = vunpack.c.l.b16 %v57
    %v156 = vunpack.c.h.b16 %v57
    %v157 = vunpack.c.l.b16 %v58
    %v158 = vunpack.c.h.b16 %v58
    %v159 = vunpack.c.l.b16 %v59
    %v160 = vunpack.c.h.b16 %v59
    %v161 = vunpack.c.l.b16 %v60
    %v162 = vunpack.c.h.b16 %v60
    %v163 = vunpack.c.l.b16 %v61
    %v164 = vunpack.c.h.b16 %v61
    %v165 = vunpack.c.l.b16 %v62
    %v166 = vunpack.c.h.b16 %v62
    %v167 = vunpack.c.l.b16 %v63
    %v168 = vunpack.c.h.b16 %v63
    %v169 = vunpack.c.l.b16 %v64
    %v170 = vunpack.c.h.b16 %v64
    %v171 = vunpack.c.l.b16 %v65
    %v172 = vunpack.c.h.b16 %v65
    %v173 = vunpack.c.l.b16 %v66
    %v174 = vunpack.c.h.b16 %v66
    %v175 = vunpack.c.l.b16 %v67
    %v176 = vunpack.c.h.b16 %v67
    %v177 = vunpack.c.l.b16 %v68
    %v178 = vunpack.c.h.b16 %v68
    %v179 = vunpack.c.l.b16 %v69
    %v180 = vunpack.c.h.b16 %v69
    %v181 = vunpack.c.l.b16 %v70
    %v182 = vunpack.c.h.b16 %v70
    %v183 = vunpack.c.l.b16 %v71
    %v184 = vunpack.c.h.b16 %v71
    %v185 = vunpack.c.l.b16 %v72
    %v186 = vunpack.c.h.b16 %v72
    %v187 = vunpack.c.l.b16 %v73
    %v188 = vunpack.c.h.b16 %v73
    %v189 = vpack.c.b16 %v127, %v125
    %v190 = vpack.c.b16 %v128, %v126
    %v191 = vpack.c.b16 %v131, %v129
    %v192 = vpack.c.b16 %v132, %v130
    %v193 = vpack.c.b16 %v135, %v133
    %v194 = vpack.c.b16 %v136, %v134
    %v195 = vpack.c.b16 %v139, %v137
    %v196 = vpack.c.b16 %v140, %v138
    %v197 = vpack.c.b16 %v143, %v141
    %v198 = vpack.c.b16 %v144, %v142
    %v199 = vpack.c.b16 %v147, %v145
    %v200 = vpack.c.b16 %v148, %v146
    %v201 = vpack.c.b16 %v151, %v149
    %v202 = vpack.c.b16 %v152, %v150
    %v203 = vpack.c.b16 %v155, %v153
    %v204 = vpack.c.b16 %v156, %v154
    %v205 = vpack.c.b16 %v159, %v157
    %v206 = vpack.c.b16 %v160, %v158
    %v207 = vpack.c.b16 %v163, %v161
    %v208 = vpack.c.b16 %v164, %v162
    %v209 = vpack.c.b16 %v167, %v165
    %v210 = vpack.c.b16 %v168, %v166
    %v211 = vpack.c.b16 %v171, %v169
    %v212 = vpack.c.b16 %v172, %v170
    %v213 = vpack.c.b16 %v175, %v173
    %v214 = vpack.c.b16 %v176, %v174
    %v215 = vpack.c.b16 %v179, %v177
    %v216 = vpack.c.b16 %v180, %v178
    %v217 = vpack.c.b16 %v183, %v181
    %v218 = vpack.c.b16 %v184, %v182
    %v219 = vpack.c.b16 %v187, %v185
    %v220 = vpack.c.b16 %v188, %v186
    %253 = vmatprep.subr.bf16.mxu0 %v204
    %254 = vmatpush1.bf16.msra.mxu0 %v203
    %255 = vmatprep.subr.bf16.mxu0 %v202
    %256 = vmatpush1.bf16.msra.mxu0 %v201
    %257 = vmatprep.subr.bf16.mxu0 %v200
    %258 = vmatpush1.bf16.msra.mxu0 %v199
    %259 = vmatprep.subr.bf16.mxu0 %v198
    %260 = vmatpush1.bf16.msra.mxu0 %v197
    %261 = vmatprep.subr.bf16.mxu0 %v196
    %262 = vmatpush1.bf16.msra.mxu0 %v195
    %263 = vmatprep.subr.bf16.mxu0 %v194
    %264 = vmatpush1.bf16.msra.mxu0 %v193
    %265 = vmatprep.subr.bf16.mxu0 %v192
    %266 = vmatpush1.bf16.msra.mxu0 %v191
    %267 = vmatprep.subr.bf16.mxu0 %v190
    %268 = vmatpush1.bf16.msra.mxu0 %v189
    %269 = vmatprep.subr.bf16.mxu0 %v220
    %270 = vmatpush2.bf16.msra.mxu0 %v219
    %271 = vmatprep.subr.bf16.mxu0 %v218
    %272 = vmatpush2.bf16.msra.mxu0 %v217
    %273 = vmatprep.subr.bf16.mxu0 %v216
    %274 = vmatpush2.bf16.msra.mxu0 %v215
    %275 = vmatprep.subr.bf16.mxu0 %v214
    %276 = vmatpush2.bf16.msra.mxu0 %v213
    %277 = vmatprep.subr.bf16.mxu0 %v212
    %278 = vmatpush2.bf16.msra.mxu0 %v211
    %279 = vmatprep.subr.bf16.mxu0 %v210
    %280 = vmatpush2.bf16.msra.mxu0 %v209
    %281 = vmatprep.subr.bf16.mxu0 %v208
    %282 = vmatpush2.bf16.msra.mxu0 %v207
    %283 = vmatprep.subr.bf16.mxu0 %v206
    %284 = vmatpush2.bf16.msra.mxu0 %v205
    %285 = vmatprep.mubr.bf16.mxu0 %v90
    %286 = vmatmul.mubr.bf16.gmra.mxu0 %v89
    %v287 = vpop.f32.mrf.mxu0
    %v288 = vadd.f32 %v79, %v287
    %v289 = vpop.f32.mrf.mxu0
    %v290 = vadd.f32 %v83, %v289
    %v291 = vpop.f32.mrf.mxu0
    %v292 = vpop.f32.mrf.mxu0
    %293 = vdwg.mxu0
    %v294 = vtanh.pop %v288
    %v295 = vtanh.pop %v290
    %296 = vst [vmem:[#allocation7] sm:$0xff] %v294
    %297 = vst [vmem:[#allocation7 + $0x8] sm:$0xff] %v295
    // Predicated region
    $region22: #{tpu_custom_call.1} parent=1 // pred_check
      _
    $region23: #{tpu_custom_call.1} parent=1 // pred_check_branch
      %299 = sbr.rel (0) target = $region25
    $region24: #{tpu_custom_call.1} parent=1 // pred_region
      %s301 = ssub.s32 256, 256
      %302 = vsyncadd [#allocation4], %s301
      %s304 = sshll.u32 [#allocation7], 4
      %s305 = int_to_ptr.vmem [resolvable:$true] %s304
      %307 = dma.vmem_to_hbm [thread:$0]  %s305, 256, %s3, [#allocation4]
    $region25: #{tpu_custom_call.1} parent=1 // pred_fallthru
      _
    // Predicated region
    $region26: #{tpu_custom_call.1} parent=1 // pred_check
      _
    $region27: #{tpu_custom_call.1} parent=1 // pred_check_branch
      %309 = sbr.rel (0) target = $region29
    $region28: #{tpu_custom_call.1} parent=1 // pred_region
      %310 = dma.done [#allocation4], 256
    $region29: #{tpu_custom_call.1} parent=1 // pred_fallthru
      _
    %311 = vsyncpa [#allocation3], 1
    %312 = vsyncpa [#allocation6], 1
    %313 = vsyncpa [#allocation4], 1

</llo_original>
